<compile_context>
chip_gen: v7x
topology: tpu7x:2x2x1
jax: 0.10.0
libtpu: 0.0.40
codegen_flags: <defaults>
</compile_context>

<pallas_src>
import functools

import jax
import jax.numpy as jnp
from jax import lax
from jax.experimental import pallas as pl
from jax.experimental.pallas import tpu as pltpu


def _round_up(x, mult):
    return ((x + mult - 1) // mult) * mult


def _cosface_kernel(labels_ref, logits_ref, out_ref, *, s, ms, tn):
    # labels_ref: (tm, 1) int32; logits_ref / out_ref: (tm, tn)
    j = pl.program_id(1)                       # column-tile index (0 if full-row blocks)
    logits = logits_ref[...].astype(jnp.float32)
    labels = labels_ref[...]                   # (tm, 1)

    tm = logits.shape[0]
    col_idx = lax.broadcasted_iota(jnp.int32, (tm, tn), 1) + j * tn
    hit = (col_idx == labels) & (labels != -1)  # broadcast over lanes

    out = logits * s - jnp.where(hit, ms, 0.0)  # ms = m*s precomputed
    out_ref[...] = out.astype(out_ref.dtype)


def cosface(logits, labels, *, s=64.0, m=0.4, target_tile_bytes=4 << 20,
            vmem_limit_bytes=48 << 20):
    N, C = logits.shape
    dtype = logits.dtype
    itemsize = jnp.dtype(dtype).itemsize
    sub = max(8, 32 // itemsize)               # sublane multiple: f32->8, bf16->16, int8->32

    # ---- tile selection: big lane-dense blocks, full rows if they fit -------
    c128 = _round_up(C, 128)
    row_bytes = c128 * itemsize
    if row_bytes <= target_tile_bytes:
        tn = c128                                           # full-row block
        max_rows = max(sub, (target_tile_bytes // row_bytes) // sub * sub)
        tm = min(max_rows, _round_up(N, sub))
    else:
        tm = sub                                            # C too wide: tile columns too
        tn = max(128, (target_tile_bytes // (tm * itemsize)) // 128 * 128)

    N_pad = _round_up(N, tm)
    C_pad = _round_up(C, tn)

    # ---- pad inputs to tile multiples (labels padded with ignore = -1) ------
    labels_i32 = labels.astype(jnp.int32)
    if N_pad != N:
        labels_i32 = jnp.pad(labels_i32, (0, N_pad - N), constant_values=-1)
    labels_2d = labels_i32.reshape(N_pad, 1)

    logits_in = logits
    if N_pad != N or C_pad != C:
        logits_in = jnp.pad(logits, ((0, N_pad - N), (0, C_pad - C)))

    kernel = functools.partial(_cosface_kernel, s=float(s), ms=float(m) * float(s), tn=tn)

    out_full = pl.pallas_call(
        kernel,
        out_shape=jax.ShapeDtypeStruct((N_pad, C_pad), dtype),
        grid_spec=pltpu.PrefetchScalarGridSpec(
            num_scalar_prefetch=0,
            grid=(N_pad // tm, C_pad // tn),
            in_specs=[
                pl.BlockSpec((tm, 1), lambda i, j: (i, 0)),    # labels column
                pl.BlockSpec((tm, tn), lambda i, j: (i, j)),   # logits tile
            ],
            out_specs=pl.BlockSpec((tm, tn), lambda i, j: (i, j)),
        ),
        input_output_aliases={1: 0},           # scaled logits overwrite the input buffer
        compiler_params=pltpu.CompilerParams(
            dimension_semantics=("parallel", "parallel"),
            vmem_limit_bytes=vmem_limit_bytes,
        ),
    )(labels_2d, logits_in)

    if N_pad != N or C_pad != C:
        return out_full[:N, :C]
    return out_full


def cosface_ref(logits, labels, *, s=64.0, m=0.4):
    valid = labels != -1
    onehot = (labels[:, None] == jnp.arange(logits.shape[1])[None, :]) & valid[:, None]
    return (logits - m * onehot.astype(logits.dtype)) * s


if __name__ == "__main__":
    key = jax.random.PRNGKey(0)
    k1, k2 = jax.random.split(key)

    N, C = 8, 256  # small batch, num_classes
    logits = jax.random.normal(k1, (N, C), dtype=jnp.float32)
    labels = jax.random.randint(k2, (N,), 0, C, dtype=jnp.int32)
    # Mark a couple of rows as "ignore" (-1), matching the PyTorch filter.
    labels = labels.at[1].set(-1).at[5].set(-1)

    out = cosface(logits, labels, s=64.0, m=0.4)
    out = jax.block_until_ready(out)

    ref = cosface_ref(logits, labels, s=64.0, m=0.4)
    assert out.shape == ref.shape
    assert jnp.allclose(out, ref, atol=1e-4, rtol=1e-5), "mismatch vs reference"

    print("KERNEL_OK")
</pallas_src>

<mosaic_0001>
module attributes {stable_mosaic.version = 11 : i64} {
  func.func @_cosface_kernel(%arg0: i32, %arg1: i32, %arg2: memref<8x1xi32, #tpu.memory_space<vmem>>, %arg3: memref<8x256xf32, #tpu.memory_space<vmem>>, %arg4: memref<8x256xf32, #tpu.memory_space<vmem>>) attributes {dimension_semantics = [#tpu.dimension_semantics<parallel>, #tpu.dimension_semantics<parallel>], iteration_bounds = array<i64: 1, 1>, scalar_prefetch = 0 : i64, scratch_operands = 0 : i64, tpu.core_type = #tpu.core_type<tc>, window_params = [{transform_indices = @transform_0, window_bounds = array<i64: 8, 1>}, {transform_indices = @transform_1, window_bounds = array<i64: 8, 256>}, {transform_indices = @transform_2, window_bounds = array<i64: 8, 256>}]} {
    %c0 = arith.constant 0 : index
    %c0_0 = arith.constant 0 : index
    %0 = vector.load %arg3[%c0, %c0_0] : memref<8x256xf32, #tpu.memory_space<vmem>>, vector<8x256xf32>
    %c0_1 = arith.constant 0 : index
    %c0_2 = arith.constant 0 : index
    %1 = vector.load %arg2[%c0_1, %c0_2] : memref<8x1xi32, #tpu.memory_space<vmem>>, vector<8x1xi32>
    %2 = tpu.iota {dimensions = array<i32: 1>} : vector<8x256xi32>
    %c256_i32 = arith.constant 256 : i32
    %3 = arith.muli %arg1, %c256_i32 : i32
    %4 = vector.broadcast %3 : i32 to vector<8x256xi32>
    %5 = arith.addi %2, %4 : vector<8x256xi32>
    %6 = vector.broadcast %1 : vector<8x1xi32> to vector<8x256xi32>
    %7 = arith.cmpi eq, %5, %6 : vector<8x256xi32>
    %c-1_i32 = arith.constant -1 : i32
    %8 = vector.broadcast %c-1_i32 : i32 to vector<8x1xi32>
    %9 = arith.cmpi ne, %1, %8 : vector<8x1xi32>
    %10 = vector.broadcast %9 : vector<8x1xi1> to vector<8x256xi1>
    %11 = arith.andi %7, %10 : vector<8x256xi1>
    %cst = arith.constant 6.400000e+01 : f32
    %12 = vector.broadcast %cst : f32 to vector<8x256xf32>
    %13 = arith.mulf %0, %12 : vector<8x256xf32>
    %cst_3 = arith.constant 2.560000e+01 : f32
    %cst_4 = arith.constant 0.000000e+00 : f32
    %14 = vector.broadcast %cst_3 : f32 to vector<8x256xf32>
    %15 = vector.broadcast %cst_4 : f32 to vector<8x256xf32>
    %16 = arith.select %11, %14, %15 : vector<8x256xi1>, vector<8x256xf32>
    %17 = arith.subf %13, %16 : vector<8x256xf32>
    %c0_5 = arith.constant 0 : index
    %c0_6 = arith.constant 0 : index
    %18 = vector.load %arg4[%c0_5, %c0_6] : memref<8x256xf32, #tpu.memory_space<vmem>>, vector<8x256xf32>
    tpu.vector_store %arg4[%c0_5, %c0_6], %17 {strides = array<i32>} : memref<8x256xf32, #tpu.memory_space<vmem>>, vector<8x256xf32>,
    return
  }
  func.func @transform_0(%arg0: i32, %arg1: i32) -> (i32, i32) {
    %c0_i32 = arith.constant 0 : i32
    %c0_i32_0 = arith.constant 0 : i32
    return %arg0, %c0_i32 : i32, i32
  }
  func.func @transform_1(%arg0: i32, %arg1: i32) -> (i32, i32) {
    %c0_i32 = arith.constant 0 : i32
    return %arg0, %arg1 : i32, i32
  }
  func.func @transform_2(%arg0: i32, %arg1: i32) -> (i32, i32) {
    %c0_i32 = arith.constant 0 : i32
    return %arg0, %arg1 : i32, i32
  }
}

</mosaic_0001>

<llo_original>
// kernel: tpu_custom_call.1
$region0: #{tpu_custom_call.1}
  #allocation0 [shape = 'u32[]', space=smem, size = 0x4, offset = 0x4, fixed_abs, tag = 'smem constant byte address 0x4 - core index']
  #allocation1 [shape = 'u32[144,128]{1,0:T(1,128)}', space=vmem, size = 0x12000, scoped, tag = 'internal scratch']
  %s0 = inlined_call_operand.vmem [shape: s32[8,1], index: 0, kind: input, shape index: {}]
  %s1 = inlined_call_operand.hbm [shape: f32[8,256], index: 1, kind: input, shape index: {}, may-alias: {1,2}]
  %s2 = inlined_call_operand.hbm [shape: f32[8,256], index: 2, kind: output, shape index: {}, may-alias: {1,2}]
  %s3 = sld [smem:[#allocation0]]
  $region22: #{tpu_custom_call.1} parent=0
    _
  %s5 = ssub.s32 1, %s3
  %s6 = scalar_select 0, %s5, %s3
  $region1: #{tpu_custom_call.1} parent=0
    #allocation2 [shape = 'u8[8192]{0}', space=vmem, size = 0x2000, scoped, tag = 'input window, operand 1, single buffered']
    #allocation3 [shape = 's32[1]{0}', space=sflag, size = 0x4, scoped, tag = 'scoped memory for tpu_custom_call.1']
    #allocation4 [shape = 's32[1]{0}', space=sflag, size = 0x4, scoped, tag = 'scoped memory for tpu_custom_call.1']
    #allocation5 [shape = 'u8[8192]{0}', space=vmem, size = 0x2000, scoped, tag = 'output window, operand 0, single buffered']
    %7 = vsyncpa [#allocation3], 0
    %8 = vsyncpa [#allocation4], 0
    // Predicated region
    $region2: #{tpu_custom_call.1} parent=1 // pred_check
      _
    $region3: #{tpu_custom_call.1} parent=1 // pred_check_branch
      %10 = sbr.rel (0) target = $region5
    $region4: #{tpu_custom_call.1} parent=1 // pred_region
      _
    $region5: #{tpu_custom_call.1} parent=1 // pred_fallthru
      _
    // Predicated region
    $region6: #{tpu_custom_call.1} parent=1 // pred_check
      _
    $region7: #{tpu_custom_call.1} parent=1 // pred_check_branch
      %12 = sbr.rel (0) target = $region9
    $region8: #{tpu_custom_call.1} parent=1 // pred_region
      %s14 = ssub.s32 256, 256
      %15 = vsyncadd [#allocation3], %s14
      %s17 = sshll.u32 [#allocation2], 4
      %s18 = int_to_ptr.vmem [resolvable:$true] %s17
      %20 = dma.hbm_to_vmem [thread:$0]  %s1, 256, %s18, [#allocation3]
    $region9: #{tpu_custom_call.1} parent=1 // pred_fallthru
      _
    // Predicated region
    $region10: #{tpu_custom_call.1} parent=1 // pred_check
      _
    $region11: #{tpu_custom_call.1} parent=1 // pred_check_branch
      %22 = sbr.rel (0) target = $region13
    $region12: #{tpu_custom_call.1} parent=1 // pred_region
      %23 = dma.done [#allocation3], 256
    $region13: #{tpu_custom_call.1} parent=1 // pred_fallthru
      _
    %v24 = vld [vmem:[#allocation2] sm:$0xff]
    %v25 = vld [vmem:[#allocation2 + $0x8] sm:$0xff]
    %v26 = vld [vmem:[%s0] sm:$0xff]
    %v27 = vlaneseq
    %v28 = vand.u32 %v27, 127
    %v29 = vadd.s32 %v28, 128
    %s30 = smul.u32 0, 256
    %v31 = vstv %s30
    %v32 = vadd.s32 %v28, %v31
    %v33 = vadd.s32 %v29, %v31
    %34 = vset.pattern.permute.xlu0 0
    %35 = vperm.xlu0 %34, %v26
    %v36 = vpop.permute.xlu0 %35
    %vm37 = vcmp.eq.s32.totalorder %v32, %v36
    %vm38 = vcmp.eq.s32.totalorder %v33, %v36
    %vm39 = vcmp.ne.s32.totalorder %v26, 4294967295
    %v40 = vsel %vm39, 1, 0
    %41 = vset.pattern.permute.xlu0 0
    %42 = vperm.xlu0 %41, %v40
    %v43 = vpop.permute.xlu0 %42
    %vm44 = vcmp.eq.s32.totalorder %v43, 1
    %vm45 = vmand %vm37, %vm44
    %vm46 = vmand %vm38, %vm44
    %v47 = vmul.f32 %v24, 64.0
    %v48 = vmul.f32 %v25, 64.0
    %v49 = vsel %vm45, 25.6, 0.0
    %v50 = vsel %vm46, 25.6, 0.0
    %v51 = vsub.f32 %v47, %v49
    %v52 = vsub.f32 %v48, %v50
    %53 = vst [vmem:[#allocation5] sm:$0xff] %v51
    %54 = vst [vmem:[#allocation5 + $0x8] sm:$0xff] %v52
    // Predicated region
    $region14: #{tpu_custom_call.1} parent=1 // pred_check
      _
    $region15: #{tpu_custom_call.1} parent=1 // pred_check_branch
      %56 = sbr.rel (0) target = $region17
    $region16: #{tpu_custom_call.1} parent=1 // pred_region
      %s58 = ssub.s32 256, 256
      %59 = vsyncadd [#allocation4], %s58
      %s61 = sshll.u32 [#allocation5], 4
      %s62 = int_to_ptr.vmem [resolvable:$true] %s61
      %64 = dma.vmem_to_hbm [thread:$0]  %s62, 256, %s2, [#allocation4]
    $region17: #{tpu_custom_call.1} parent=1 // pred_fallthru
      _
    // Predicated region
    $region18: #{tpu_custom_call.1} parent=1 // pred_check
      _
    $region19: #{tpu_custom_call.1} parent=1 // pred_check_branch
      %66 = sbr.rel (0) target = $region21
    $region20: #{tpu_custom_call.1} parent=1 // pred_region
      %67 = dma.done [#allocation4], 256
    $region21: #{tpu_custom_call.1} parent=1 // pred_fallthru
      _
    %68 = vsyncpa [#allocation3], 1
    %69 = vsyncpa [#allocation4], 1

</llo_original>
